<compile_context>
chip_gen: v6e
topology: v6e:2x2x1
jax: 0.10.0
libtpu: 0.0.40
codegen_flags: <defaults>
</compile_context>

<pallas_src>
import jax
import jax.numpy as jnp
from jax.experimental import pallas as pl
from jax.experimental.pallas import tpu as pltpu

N = 5              # torch feature size
H = 2 * N          # hidden size (10)
K_PAD = 8          # padded input-feature rows of x^T   (5 -> 8, sublane multiple)
OUT_PAD = 8        # padded output-feature rows of out^T (5 -> 8, sublane multiple)
F_PAD = 128        # padded hidden width (lane-dense intermediates / MXU friendly)
ONES_ROW = N       # row of x^T that carries the constant 1.0 (bias fold)
CARRIER = H        # hidden row that keeps carrying 1.0 through the ReLUs


def mlp_kernel(x_ref, w1_ref, w2_ref, w3_ref, o_ref):
    """x_ref: (K_PAD, tb) activations^T; w*_ref: padded transposed weights with
    biases folded in; o_ref: (OUT_PAD, tb) f32 output^T.

    Each layer is one MXU matmul (f32 accumulation) + one f32 VPU ReLU; the
    inter-layer cast keeps the bf16 MXU path when params are bf16 and is a
    no-op for f32 params.  No transposes, broadcasts or masked stores in the
    body -- everything is lane-dense along the batch axis.
    """
    x = x_ref[...]
    h1 = jnp.maximum(
        jnp.dot(w1_ref[...], x, preferred_element_type=jnp.float32), 0.0)
    h1 = h1.astype(w2_ref.dtype)
    h2 = jnp.maximum(
        jnp.dot(w2_ref[...], h1, preferred_element_type=jnp.float32), 0.0)
    h2 = h2.astype(w3_ref.dtype)
    out = jnp.dot(w3_ref[...], h2, preferred_element_type=jnp.float32)
    o_ref[...] = out.astype(o_ref.dtype)


def init_params(key):
    """Deterministic init matching torch.nn.Linear fan-in bounds.
    Weights stored as (in, out); biases as (out,)."""
    ks = jax.random.split(key, 6)

    def uniform(k, shape, fan_in):
        bound = 1.0 / jnp.sqrt(jnp.float32(fan_in))
        return jax.random.uniform(k, shape, jnp.float32, -bound, bound)

    return {
        "w1": uniform(ks[0], (N, H), N),
        "b1": uniform(ks[1], (H,), N),
        "w2": uniform(ks[2], (H, H), H),
        "b2": uniform(ks[3], (H,), H),
        "w3": uniform(ks[4], (H, N), H),
        "b3": uniform(ks[5], (N,), H),
    }


def pack_params(params, dtype=jnp.float32):
    """Pad + transpose weights to MXU/lane-friendly shapes and fold biases.

    The transposed activations x^T carry a constant 1.0 in row ONES_ROW; each
    layer's bias sits in the weight column hit by that carrier, and each padded
    weight forwards the 1.0 to row CARRIER of its output so the next layer can
    do the same.  Zero padding + ReLU keeps all other padded rows exactly 0.
    """
    w1, b1, w2, b2, w3, b3 = (params[k] for k in ("w1", "b1", "w2", "b2", "w3", "b3"))
    W1 = (jnp.zeros((F_PAD, K_PAD), jnp.float32)
          .at[:H, :N].set(w1.T).at[:H, ONES_ROW].set(b1)
          .at[CARRIER, ONES_ROW].set(1.0))
    W2 = (jnp.zeros((F_PAD, F_PAD), jnp.float32)
          .at[:H, :H].set(w2.T).at[:H, CARRIER].set(b2)
          .at[CARRIER, CARRIER].set(1.0))
    W3 = (jnp.zeros((OUT_PAD, F_PAD), jnp.float32)
          .at[:N, :H].set(w3.T).at[:N, CARRIER].set(b3))
    return W1.astype(dtype), W2.astype(dtype), W3.astype(dtype)


def _vmem_safe_block_cols(requested, dtype):
    """Clamp the tile (batch columns per step) so the per-step VMEM estimate
    stays under ~12 MiB: safe under v5e's 16 MiB default scoped VMEM and far
    inside v6e's 32 MiB default and v7x's 64 MiB physical budget."""
    item = jnp.dtype(dtype).itemsize
    bytes_per_col = (
        2 * K_PAD * item        # x^T block, double-buffered
        + 2 * OUT_PAD * 4       # f32 out^T block, double-buffered
        + 2 * F_PAD * 4         # h1/h2 f32 intermediates live in VMEM
    )
    budget = 12 * 1024 * 1024
    cap = max(128, (budget // bytes_per_col) // 128 * 128)
    return max(128, (min(int(requested), cap) // 128) * 128)


def net_forward(x, packed, *, block_cols=4096, use_core_parallel=False,
                vmem_limit_bytes=None):
    """x: (B, N) float32. packed: (W1, W2, W3) from pack_params.

    block_cols: batch columns per grid step (tunable per generation; clamped to
    a VMEM-safe value).  use_core_parallel: mark the batch grid axis
    CORE_PARALLEL so both v7x TensorCores split it (leave False on v5e/v6e).
    """
    B = x.shape[0]
    W1, W2, W3 = packed
    dt = W1.dtype

    block_cols = _vmem_safe_block_cols(block_cols, dt)
    b128 = 128 * pl.cdiv(B, 128)          # batch rounded to the lane granule
    if b128 <= block_cols:
        tb, num_tiles = b128, 1
    else:
        num_tiles = pl.cdiv(b128, block_cols)
        if use_core_parallel and num_tiles % 2:
            num_tiles += 1                # keep both v7x TensorCores evenly loaded
        # Derive the tile from the rounded batch so over-padding stays < 128
        # rows per tile (instead of up to tb-1 rows for awkward batch sizes).
        tb = 128 * pl.cdiv(pl.cdiv(b128, num_tiles), 128)
    bp = tb * num_tiles

    # Transposed, padded activations: (K_PAD, bp) with row ONES_ROW == 1.0.
    # NOTE: padded batch columns (>= B) carry the bias-propagated activations
    # of an all-zero input -- they are NOT zero.  They are sliced off below and
    # must never be reduced over.  allow_input_fusion lets XLA fuse this
    # pad/transpose into the pallas call instead of materializing it in HBM.
    x_t = jnp.zeros((K_PAD, bp), dt)
    x_t = x_t.at[:N, :B].set(x.astype(dt).T)
    x_t = x_t.at[ONES_ROW, :].set(1.0)

    out_shape = jax.ShapeDtypeStruct((OUT_PAD, bp), jnp.float32)
    fuse_x = [True, False, False, False]

    if num_tiles == 1:
        out_t = pl.pallas_call(
            mlp_kernel,
            out_shape=out_shape,
            compiler_params=pltpu.CompilerParams(
                allow_input_fusion=fuse_x,
                vmem_limit_bytes=vmem_limit_bytes),
        )(x_t, W1, W2, W3)
    else:
        sem = pltpu.CORE_PARALLEL if use_core_parallel else "parallel"
        out_t = pl.pallas_call(
            mlp_kernel,
            out_shape=out_shape,
            grid=(num_tiles,),
            in_specs=[
                pl.BlockSpec((K_PAD, tb), lambda i: (0, i)),      # x^T tile
                pl.BlockSpec((F_PAD, K_PAD), lambda i: (0, 0)),   # resident weights
                pl.BlockSpec((F_PAD, F_PAD), lambda i: (0, 0)),
                pl.BlockSpec((OUT_PAD, F_PAD), lambda i: (0, 0)),
            ],
            out_specs=pl.BlockSpec((OUT_PAD, tb), lambda i: (0, i)),
            compiler_params=pltpu.CompilerParams(
                dimension_semantics=(sem,),
                allow_input_fusion=fuse_x,
                vmem_limit_bytes=vmem_limit_bytes),
        )(x_t, W1, W2, W3)

    # Tiny (5, B) -> (B, 5) untranspose in the wrapper; re-reads only 32 B/row.
    return out_t[:N, :B].T.astype(x.dtype)


def reference_forward(x, p):
    h1 = jnp.maximum(x @ p["w1"] + p["b1"], 0.0)
    h2 = jnp.maximum(h1 @ p["w2"] + p["b2"], 0.0)
    return h2 @ p["w3"] + p["b3"]


if __name__ == "__main__":
    key = jax.random.PRNGKey(0)
    k_p, k_x1, k_x2, k_x3 = jax.random.split(key, 4)
    params = init_params(k_p)
    packed = pack_params(params)

    # Small batch (matches the torch usage): single un-gridded block.
    x_small = jax.random.normal(k_x1, (8, N), jnp.float32)
    out_small = jax.block_until_ready(net_forward(x_small, packed))
    ref_small = reference_forward(x_small, params)
    assert out_small.shape == (8, N)
    assert jnp.allclose(out_small, ref_small, atol=1e-5, rtol=1e-5)

    # Odd-sized larger batch exercising the tiled "parallel" grid path and the
    # reduced-over-padding tile derivation (4133 rows, 1024-col tiles).
    B_big = 4133
    x_big = jax.random.normal(k_x2, (B_big, N), jnp.float32)
    out_big = jax.block_until_ready(net_forward(x_big, packed, block_cols=1024))
    ref_big = reference_forward(x_big, params)
    assert out_big.shape == (B_big, N)
    assert jnp.allclose(out_big, ref_big, atol=1e-5, rtol=1e-5)

    # bf16 params/activations option (HBM/MXU saver for v6e/v7x large batches);
    # accumulation stays f32 so the error is small.
    packed_bf16 = pack_params(params, dtype=jnp.bfloat16)
    B_med = 2048
    x_med = jax.random.normal(k_x3, (B_med, N), jnp.float32)
    out_bf16 = jax.block_until_ready(
        net_forward(x_med, packed_bf16, block_cols=1024))
    ref_med = reference_forward(x_med, params)
    assert out_bf16.shape == (B_med, N)
    assert jnp.allclose(out_bf16, ref_med, atol=5e-2, rtol=5e-2)

    print("KERNEL_OK")
</pallas_src>

<mosaic_0001>
module attributes {stable_mosaic.version = 11 : i64} {
  func.func @mlp_kernel(%arg0: memref<8x128xf32, #tpu.memory_space<vmem>>, %arg1: memref<128x8xf32, #tpu.memory_space<vmem>>, %arg2: memref<128x128xf32, #tpu.memory_space<vmem>>, %arg3: memref<8x128xf32, #tpu.memory_space<vmem>>, %arg4: memref<8x128xf32, #tpu.memory_space<vmem>>) attributes {dimension_semantics = [], scalar_prefetch = 0 : i64, scratch_operands = 0 : i64, tpu.core_type = #tpu.core_type<tc>} {
    %c0 = arith.constant 0 : index
    %c0_0 = arith.constant 0 : index
    %0 = vector.load %arg0[%c0, %c0_0] : memref<8x128xf32, #tpu.memory_space<vmem>>, vector<8x128xf32>
    %c0_1 = arith.constant 0 : index
    %c0_2 = arith.constant 0 : index
    %1 = vector.load %arg1[%c0_1, %c0_2] : memref<128x8xf32, #tpu.memory_space<vmem>>, vector<128x8xf32>
    %cst = arith.constant dense<0.000000e+00> : vector<128x128xf32>
    %2 = tpu.matmul %1, %0, %cst {dimension_numbers = #tpu.dot_dimension_numbers<[1], [0], [0], [1], [0, 0, 1, 1], [], []>} : vector<128x8xf32>, vector<8x128xf32>, vector<128x128xf32> -> vector<128x128xf32>
    %cst_3 = arith.constant 0.000000e+00 : f32
    %3 = vector.broadcast %cst_3 : f32 to vector<128x128xf32>
    %4 = arith.maximumf %2, %3 : vector<128x128xf32>
    %c0_4 = arith.constant 0 : index
    %c0_5 = arith.constant 0 : index
    %5 = vector.load %arg2[%c0_4, %c0_5] : memref<128x128xf32, #tpu.memory_space<vmem>>, vector<128x128xf32>
    %cst_6 = arith.constant dense<0.000000e+00> : vector<128x128xf32>
    %6 = tpu.matmul %5, %4, %cst_6 {dimension_numbers = #tpu.dot_dimension_numbers<[1], [0], [0], [1], [0, 0, 1, 1], [], []>} : vector<128x128xf32>, vector<128x128xf32>, vector<128x128xf32> -> vector<128x128xf32>
    %cst_7 = arith.constant 0.000000e+00 : f32
    %7 = vector.broadcast %cst_7 : f32 to vector<128x128xf32>
    %8 = arith.maximumf %6, %7 : vector<128x128xf32>
    %c0_8 = arith.constant 0 : index
    %c0_9 = arith.constant 0 : index
    %9 = vector.load %arg3[%c0_8, %c0_9] : memref<8x128xf32, #tpu.memory_space<vmem>>, vector<8x128xf32>
    %cst_10 = arith.constant dense<0.000000e+00> : vector<8x128xf32>
    %10 = tpu.matmul %9, %8, %cst_10 {dimension_numbers = #tpu.dot_dimension_numbers<[1], [0], [0], [1], [0, 0, 1, 1], [], []>} : vector<8x128xf32>, vector<128x128xf32>, vector<8x128xf32> -> vector<8x128xf32>
    %c0_11 = arith.constant 0 : index
    %c0_12 = arith.constant 0 : index
    %11 = vector.load %arg4[%c0_11, %c0_12] : memref<8x128xf32, #tpu.memory_space<vmem>>, vector<8x128xf32>
    tpu.vector_store %arg4[%c0_11, %c0_12], %10 {strides = array<i32>} : memref<8x128xf32, #tpu.memory_space<vmem>>, vector<8x128xf32>,
    return
  }
}

</mosaic_0001>

<llo_original>
// kernel: tpu_custom_call.1
$region0: #{tpu_custom_call.1}
  #allocation0 [shape = 'u32[]', space=smem, size = 0x4, offset = 0x4, fixed_abs, tag = 'smem constant byte address 0x4 - core index']
  #allocation1 [shape = 'u32[144,128]{1,0:T(1,128)}', space=vmem, size = 0x12000, scoped, tag = 'internal scratch']
  %s0 = inlined_call_operand.vmem [shape: f32[8,128], index: 0, kind: input, shape index: {}]
  %s1 = inlined_call_operand.vmem [shape: f32[128,8], index: 1, kind: input, shape index: {}]
  %s2 = inlined_call_operand.vmem [shape: f32[128,128], index: 2, kind: input, shape index: {}]
  %s3 = inlined_call_operand.hbm [shape: f32[8,128], index: 3, kind: input, shape index: {}]
  %s4 = inlined_call_operand.hbm [shape: f32[8,128], index: 4, kind: output, shape index: {}]
  %s5 = sld [smem:[#allocation0]]
  $region30: #{tpu_custom_call.1} parent=0
    _
  %s7 = ssub.s32 1, %s5
  %s8 = scalar_select 0, %s7, %s5
  $region1: #{tpu_custom_call.1} parent=0
    #allocation2 [shape = 'u8[4096]{0}', space=vmem, size = 0x1000, scoped, tag = 'input window, operand 3, single buffered']
    #allocation3 [shape = 's32[1]{0}', space=sflag, size = 0x4, scoped, tag = 'scoped memory for tpu_custom_call.1']
    #allocation4 [shape = 's32[1]{0}', space=sflag, size = 0x4, scoped, tag = 'scoped memory for tpu_custom_call.1']
    #allocation5 [shape = 'u8[4096]{0}', space=vmem, size = 0x1000, scoped, tag = 'output window, operand 0, single buffered']
    %9 = vsyncpa [#allocation3], 0
    %10 = vsyncpa [#allocation4], 0
    // Predicated region
    $region2: #{tpu_custom_call.1} parent=1 // pred_check
      _
    $region3: #{tpu_custom_call.1} parent=1 // pred_check_branch
      %12 = sbr.rel (0) target = $region5
    $region4: #{tpu_custom_call.1} parent=1 // pred_region
      _
    $region5: #{tpu_custom_call.1} parent=1 // pred_fallthru
      _
    // Predicated region
    $region6: #{tpu_custom_call.1} parent=1 // pred_check
      _
    $region7: #{tpu_custom_call.1} parent=1 // pred_check_branch
      %14 = sbr.rel (0) target = $region9
    $region8: #{tpu_custom_call.1} parent=1 // pred_region
      _
    $region9: #{tpu_custom_call.1} parent=1 // pred_fallthru
      _
    // Predicated region
    $region10: #{tpu_custom_call.1} parent=1 // pred_check
      _
    $region11: #{tpu_custom_call.1} parent=1 // pred_check_branch
      %16 = sbr.rel (0) target = $region13
    $region12: #{tpu_custom_call.1} parent=1 // pred_region
      _
    $region13: #{tpu_custom_call.1} parent=1 // pred_fallthru
      _
    // Predicated region
    $region14: #{tpu_custom_call.1} parent=1 // pred_check
      _
    $region15: #{tpu_custom_call.1} parent=1 // pred_check_branch
      %18 = sbr.rel (0) target = $region17
    $region16: #{tpu_custom_call.1} parent=1 // pred_region
      %s20 = ssub.s32 128, 128
      %21 = vsyncadd [#allocation3], %s20
      %s23 = sshll.u32 [#allocation2], 4
      %s24 = int_to_ptr.vmem [resolvable:$true] %s23
      %26 = dma.hbm_to_vmem [thread:$0]  %s3, 128, %s24, [#allocation3]
    $region17: #{tpu_custom_call.1} parent=1 // pred_fallthru
      _
    // Predicated region
    $region18: #{tpu_custom_call.1} parent=1 // pred_check
      _
    $region19: #{tpu_custom_call.1} parent=1 // pred_check_branch
      %28 = sbr.rel (0) target = $region21
    $region20: #{tpu_custom_call.1} parent=1 // pred_region
      %29 = dma.done [#allocation3], 128
    $region21: #{tpu_custom_call.1} parent=1 // pred_fallthru
      _
    %v30 = vld [vmem:[%s0] sm:$0xff]
    %v31 = vld [vmem:[%s1] sm:$0xff]
    %v32 = vld [vmem:[%s1 + $0x8] sm:$0xff]
    %v33 = vld [vmem:[%s1 + $0x10] sm:$0xff]
    %v34 = vld [vmem:[%s1 + $0x18] sm:$0xff]
    %v35 = vld [vmem:[%s1 + $0x20] sm:$0xff]
    %v36 = vld [vmem:[%s1 + $0x28] sm:$0xff]
    %v37 = vld [vmem:[%s1 + $0x30] sm:$0xff]
    %v38 = vld [vmem:[%s1 + $0x38] sm:$0xff]
    %v39 = vld [vmem:[%s1 + $0x40] sm:$0xff]
    %v40 = vld [vmem:[%s1 + $0x48] sm:$0xff]
    %v41 = vld [vmem:[%s1 + $0x50] sm:$0xff]
    %v42 = vld [vmem:[%s1 + $0x58] sm:$0xff]
    %v43 = vld [vmem:[%s1 + $0x60] sm:$0xff]
    %v44 = vld [vmem:[%s1 + $0x68] sm:$0xff]
    %v45 = vld [vmem:[%s1 + $0x70] sm:$0xff]
    %v46 = vld [vmem:[%s1 + $0x78] sm:$0xff]
    %vm47 = vcmask 64512
    %v49 = vsel %vm47, %v31, 0
    %v52 = vsel %vm47, %v32, 0
    %v55 = vsel %vm47, %v33, 0
    %v58 = vsel %vm47, %v34, 0
    %v61 = vsel %vm47, %v35, 0
    %v64 = vsel %vm47, %v36, 0
    %v67 = vsel %vm47, %v37, 0
    %v70 = vsel %vm47, %v38, 0
    %v73 = vsel %vm47, %v39, 0
    %v76 = vsel %vm47, %v40, 0
    %v79 = vsel %vm47, %v41, 0
    %v82 = vsel %vm47, %v42, 0
    %v85 = vsel %vm47, %v43, 0
    %v88 = vsel %vm47, %v44, 0
    %v91 = vsel %vm47, %v45, 0
    %v94 = vsel %vm47, %v46, 0
    %96 = vmatprep.subr.mxu0 0.0
    %97 = vmatpush1.msra.mxu0 0.0
    %98 = vmatprep.subr.mxu0 0.0
    %99 = vmatpush1.msra.mxu0 0.0
    %100 = vmatprep.subr.mxu0 0.0
    %101 = vmatpush1.msra.mxu0 0.0
    %102 = vmatprep.subr.mxu0 0.0
    %103 = vmatpush1.msra.mxu0 0.0
    %104 = vmatprep.subr.mxu0 0.0
    %105 = vmatpush1.msra.mxu0 0.0
    %106 = vmatprep.subr.mxu0 0.0
    %107 = vmatpush1.msra.mxu0 0.0
    %108 = vmatprep.subr.mxu0 0.0
    %109 = vmatpush1.msra.mxu0 0.0
    %110 = vmatprep.subr.mxu0 0.0
    %111 = vmatpush1.msra.mxu0 0.0
    %112 = vmatprep.subr.mxu0 0.0
    %113 = vmatpush1.msra.mxu0 0.0
    %114 = vmatprep.subr.mxu0 0.0
    %115 = vmatpush1.msra.mxu0 0.0
    %116 = vmatprep.subr.mxu0 0.0
    %117 = vmatpush1.msra.mxu0 0.0
    %118 = vmatprep.subr.mxu0 0.0
    %119 = vmatpush1.msra.mxu0 0.0
    %120 = vmatprep.subr.mxu0 0.0
    %121 = vmatpush1.msra.mxu0 0.0
    %122 = vmatprep.subr.mxu0 0.0
    %123 = vmatpush1.msra.mxu0 0.0
    %124 = vmatprep.subr.mxu0 0.0
    %125 = vmatpush1.msra.mxu0 0.0
    %126 = vmatprep.subr.mxu0 0.0
    %127 = vmatpush1.msra.mxu0 %v30
    %128 = vmatprep.subr.mxu0 0.0
    %129 = vmatpush2.msra.mxu0 0.0
    %130 = vmatprep.subr.mxu0 0.0
    %131 = vmatpush2.msra.mxu0 0.0
    %132 = vmatprep.subr.mxu0 0.0
    %133 = vmatpush2.msra.mxu0 0.0
    %134 = vmatprep.subr.mxu0 0.0
    %135 = vmatpush2.msra.mxu0 0.0
    %136 = vmatprep.subr.mxu0 0.0
    %137 = vmatpush2.msra.mxu0 0.0
    %138 = vmatprep.subr.mxu0 0.0
    %139 = vmatpush2.msra.mxu0 0.0
    %140 = vmatprep.subr.mxu0 0.0
    %141 = vmatpush2.msra.mxu0 0.0
    %142 = vmatprep.subr.mxu0 0.0
    %143 = vmatpush2.msra.mxu0 0.0
    %144 = vmatprep.subr.mxu0 0.0
    %145 = vmatpush2.msra.mxu0 0.0
    %146 = vmatprep.subr.mxu0 0.0
    %147 = vmatpush2.msra.mxu0 0.0
    %148 = vmatprep.subr.mxu0 0.0
    %149 = vmatpush2.msra.mxu0 0.0
    %150 = vmatprep.subr.mxu0 0.0
    %151 = vmatpush2.msra.mxu0 0.0
    %152 = vmatprep.subr.mxu0 0.0
    %153 = vmatpush2.msra.mxu0 0.0
    %154 = vmatprep.subr.mxu0 0.0
    %155 = vmatpush2.msra.mxu0 0.0
    %156 = vmatprep.subr.mxu0 0.0
    %157 = vmatpush2.msra.mxu0 0.0
    %158 = vmatprep.subr.mxu0 0.0
    %159 = vmatpush2.msra.mxu0 0.0
    %160 = vmatprep.mubr.f32.mxu0 0.0
    %161 = vmatmul.mubr.f32.gmra.mxu0 %v49
    %v162 = vpop.f32.mrf.mxu0
    %v163 = vadd.f32 0.0, %v162
    %v164 = vpop.f32.mrf.mxu0
    %165 = vmatprep.mubr.f32.mxu0 0.0
    %166 = vmatmul.mubr.f32.gmra.mxu0 %v52
    %v167 = vpop.f32.mrf.mxu0
    %v168 = vadd.f32 0.0, %v167
    %v169 = vpop.f32.mrf.mxu0
    %170 = vmatprep.mubr.f32.mxu0 0.0
    %171 = vmatmul.mubr.f32.gmra.mxu0 %v55
    %v172 = vpop.f32.mrf.mxu0
    %v173 = vadd.f32 0.0, %v172
    %v174 = vpop.f32.mrf.mxu0
    %175 = vmatprep.mubr.f32.mxu0 0.0
    %176 = vmatmul.mubr.f32.gmra.mxu0 %v58
    %v177 = vpop.f32.mrf.mxu0
    %v178 = vadd.f32 0.0, %v177
    %v179 = vpop.f32.mrf.mxu0
    %180 = vmatprep.mubr.f32.mxu0 0.0
    %181 = vmatmul.mubr.f32.gmra.mxu0 %v61
    %v182 = vpop.f32.mrf.mxu0
    %v183 = vadd.f32 0.0, %v182
    %v184 = vpop.f32.mrf.mxu0
    %185 = vmatprep.mubr.f32.mxu0 0.0
    %186 = vmatmul.mubr.f32.gmra.mxu0 %v64
    %v187 = vpop.f32.mrf.mxu0
    %v188 = vadd.f32 0.0, %v187
    %v189 = vpop.f32.mrf.mxu0
    %190 = vmatprep.mubr.f32.mxu0 0.0
    %191 = vmatmul.mubr.f32.gmra.mxu0 %v67
    %v192 = vpop.f32.mrf.mxu0
    %v193 = vadd.f32 0.0, %v192
    %v194 = vpop.f32.mrf.mxu0
    %195 = vmatprep.mubr.f32.mxu0 0.0
    %196 = vmatmul.mubr.f32.gmra.mxu0 %v70
    %v197 = vpop.f32.mrf.mxu0
    %v198 = vadd.f32 0.0, %v197
    %v199 = vpop.f32.mrf.mxu0
    %200 = vmatprep.mubr.f32.mxu0 0.0
    %201 = vmatmul.mubr.f32.gmra.mxu0 %v73
    %v202 = vpop.f32.mrf.mxu0
    %v203 = vadd.f32 0.0, %v202
    %v204 = vpop.f32.mrf.mxu0
    %205 = vmatprep.mubr.f32.mxu0 0.0
    %206 = vmatmul.mubr.f32.gmra.mxu0 %v76
    %v207 = vpop.f32.mrf.mxu0
    %v208 = vadd.f32 0.0, %v207
    %v209 = vpop.f32.mrf.mxu0
    %210 = vmatprep.mubr.f32.mxu0 0.0
    %211 = vmatmul.mubr.f32.gmra.mxu0 %v79
    %v212 = vpop.f32.mrf.mxu0
    %v213 = vadd.f32 0.0, %v212
    %v214 = vpop.f32.mrf.mxu0
    %215 = vmatprep.mubr.f32.mxu0 0.0
    %216 = vmatmul.mubr.f32.gmra.mxu0 %v82
    %v217 = vpop.f32.mrf.mxu0
    %v218 = vadd.f32 0.0, %v217
    %v219 = vpop.f32.mrf.mxu0
    %220 = vmatprep.mubr.f32.mxu0 0.0
    %221 = vmatmul.mubr.f32.gmra.mxu0 %v85
    %v222 = vpop.f32.mrf.mxu0
    %v223 = vadd.f32 0.0, %v222
    %v224 = vpop.f32.mrf.mxu0
    %225 = vmatprep.mubr.f32.mxu0 0.0
    %226 = vmatmul.mubr.f32.gmra.mxu0 %v88
    %v227 = vpop.f32.mrf.mxu0
    %v228 = vadd.f32 0.0, %v227
    %v229 = vpop.f32.mrf.mxu0
    %230 = vmatprep.mubr.f32.mxu0 0.0
    %231 = vmatmul.mubr.f32.gmra.mxu0 %v91
    %v232 = vpop.f32.mrf.mxu0
    %v233 = vadd.f32 0.0, %v232
    %v234 = vpop.f32.mrf.mxu0
    %235 = vmatprep.mubr.f32.mxu0 0.0
    %236 = vmatmul.mubr.f32.gmra.mxu0 %v94
    %v237 = vpop.f32.mrf.mxu0
    %v238 = vadd.f32 0.0, %v237
    %v239 = vpop.f32.mrf.mxu0
    %240 = vdwg.mxu0
    %v241 = vmax.f32 %v163, 0.0
    %v242 = vmax.f32 %v168, 0.0
    %v243 = vmax.f32 %v173, 0.0
    %v244 = vmax.f32 %v178, 0.0
    %v245 = vmax.f32 %v183, 0.0
    %v246 = vmax.f32 %v188, 0.0
    %v247 = vmax.f32 %v193, 0.0
    %v248 = vmax.f32 %v198, 0.0
    %v249 = vmax.f32 %v203, 0.0
    %v250 = vmax.f32 %v208, 0.0
    %v251 = vmax.f32 %v213, 0.0
    %v252 = vmax.f32 %v218, 0.0
    %v253 = vmax.f32 %v223, 0.0
    %v254 = vmax.f32 %v228, 0.0
    %v255 = vmax.f32 %v233, 0.0
    %v256 = vmax.f32 %v238, 0.0
    %v257 = vld [vmem:[%s2] sm:$0xff]
    %v258 = vld [vmem:[%s2 + $0x8] sm:$0xff]
    %v259 = vld [vmem:[%s2 + $0x10] sm:$0xff]
    %v260 = vld [vmem:[%s2 + $0x18] sm:$0xff]
    %v261 = vld [vmem:[%s2 + $0x20] sm:$0xff]
    %v262 = vld [vmem:[%s2 + $0x28] sm:$0xff]
    %v263 = vld [vmem:[%s2 + $0x30] sm:$0xff]
    %v264 = vld [vmem:[%s2 + $0x38] sm:$0xff]
    %v265 = vld [vmem:[%s2 + $0x40] sm:$0xff]
    %v266 = vld [vmem:[%s2 + $0x48] sm:$0xff]
    %v267 = vld [vmem:[%s2 + $0x50] sm:$0xff]
    %v268 = vld [vmem:[%s2 + $0x58] sm:$0xff]
    %v269 = vld [vmem:[%s2 + $0x60] sm:$0xff]
    %v270 = vld [vmem:[%s2 + $0x68] sm:$0xff]
    %v271 = vld [vmem:[%s2 + $0x70] sm:$0xff]
    %v272 = vld [vmem:[%s2 + $0x78] sm:$0xff]
    %273 = vmatprep.subr.mxu0 0.0
    %274 = vmatpush1.msra.mxu0 %v256
    %275 = vmatprep.subr.mxu0 0.0
    %276 = vmatpush1.msra.mxu0 %v255
    %277 = vmatprep.subr.mxu0 0.0
    %278 = vmatpush1.msra.mxu0 %v254
    %279 = vmatprep.subr.mxu0 0.0
    %280 = vmatpush1.msra.mxu0 %v253
    %281 = vmatprep.subr.mxu0 0.0
    %282 = vmatpush1.msra.mxu0 %v252
    %283 = vmatprep.subr.mxu0 0.0
    %284 = vmatpush1.msra.mxu0 %v251
    %285 = vmatprep.subr.mxu0 0.0
    %286 = vmatpush1.msra.mxu0 %v250
    %287 = vmatprep.subr.mxu0 0.0
    %288 = vmatpush1.msra.mxu0 %v249
    %289 = vmatprep.subr.mxu0 0.0
    %290 = vmatpush1.msra.mxu0 %v248
    %291 = vmatprep.subr.mxu0 0.0
    %292 = vmatpush1.msra.mxu0 %v247
    %293 = vmatprep.subr.mxu0 0.0
    %294 = vmatpush1.msra.mxu0 %v246
    %295 = vmatprep.subr.mxu0 0.0
    %296 = vmatpush1.msra.mxu0 %v245
    %297 = vmatprep.subr.mxu0 0.0
    %298 = vmatpush1.msra.mxu0 %v244
    %299 = vmatprep.subr.mxu0 0.0
    %300 = vmatpush1.msra.mxu0 %v243
    %301 = vmatprep.subr.mxu0 0.0
    %302 = vmatpush1.msra.mxu0 %v242
    %303 = vmatprep.subr.mxu0 0.0
    %304 = vmatpush1.msra.mxu0 %v241
    %305 = vmatprep.subr.mxu0 0.0
    %306 = vmatpush2.msra.mxu0 0.0
    %307 = vmatprep.subr.mxu0 0.0
    %308 = vmatpush2.msra.mxu0 0.0
    %309 = vmatprep.subr.mxu0 0.0
    %310 = vmatpush2.msra.mxu0 0.0
    %311 = vmatprep.subr.mxu0 0.0
    %312 = vmatpush2.msra.mxu0 0.0
    %313 = vmatprep.subr.mxu0 0.0
    %314 = vmatpush2.msra.mxu0 0.0
    %315 = vmatprep.subr.mxu0 0.0
    %316 = vmatpush2.msra.mxu0 0.0
    %317 = vmatprep.subr.mxu0 0.0
    %318 = vmatpush2.msra.mxu0 0.0
    %319 = vmatprep.subr.mxu0 0.0
    %320 = vmatpush2.msra.mxu0 0.0
    %321 = vmatprep.subr.mxu0 0.0
    %322 = vmatpush2.msra.mxu0 0.0
    %323 = vmatprep.subr.mxu0 0.0
    %324 = vmatpush2.msra.mxu0 0.0
    %325 = vmatprep.subr.mxu0 0.0
    %326 = vmatpush2.msra.mxu0 0.0
    %327 = vmatprep.subr.mxu0 0.0
    %328 = vmatpush2.msra.mxu0 0.0
    %329 = vmatprep.subr.mxu0 0.0
    %330 = vmatpush2.msra.mxu0 0.0
    %331 = vmatprep.subr.mxu0 0.0
    %332 = vmatpush2.msra.mxu0 0.0
    %333 = vmatprep.subr.mxu0 0.0
    %334 = vmatpush2.msra.mxu0 0.0
    %335 = vmatprep.subr.mxu0 0.0
    %336 = vmatpush2.msra.mxu0 0.0
    %337 = vmatprep.mubr.f32.mxu0 0.0
    %338 = vmatmul.mubr.f32.gmra.mxu0 %v257
    %v339 = vpop.f32.mrf.mxu0
    %v340 = vadd.f32 0.0, %v339
    %v341 = vpop.f32.mrf.mxu0
    %342 = vmatprep.mubr.f32.mxu0 0.0
    %343 = vmatmul.mubr.f32.gmra.mxu0 %v258
    %v344 = vpop.f32.mrf.mxu0
    %v345 = vadd.f32 0.0, %v344
    %v346 = vpop.f32.mrf.mxu0
    %347 = vmatprep.mubr.f32.mxu0 0.0
    %348 = vmatmul.mubr.f32.gmra.mxu0 %v259
    %v349 = vpop.f32.mrf.mxu0
    %v350 = vadd.f32 0.0, %v349
    %v351 = vpop.f32.mrf.mxu0
    %352 = vmatprep.mubr.f32.mxu0 0.0
    %353 = vmatmul.mubr.f32.gmra.mxu0 %v260
    %v354 = vpop.f32.mrf.mxu0
    %v355 = vadd.f32 0.0, %v354
    %v356 = vpop.f32.mrf.mxu0
    %357 = vmatprep.mubr.f32.mxu0 0.0
    %358 = vmatmul.mubr.f32.gmra.mxu0 %v261
    %v359 = vpop.f32.mrf.mxu0
    %v360 = vadd.f32 0.0, %v359
    %v361 = vpop.f32.mrf.mxu0
    %362 = vmatprep.mubr.f32.mxu0 0.0
    %363 = vmatmul.mubr.f32.gmra.mxu0 %v262
    %v364 = vpop.f32.mrf.mxu0
    %v365 = vadd.f32 0.0, %v364
    %v366 = vpop.f32.mrf.mxu0
    %367 = vmatprep.mubr.f32.mxu0 0.0
    %368 = vmatmul.mubr.f32.gmra.mxu0 %v263
    %v369 = vpop.f32.mrf.mxu0
    %v370 = vadd.f32 0.0, %v369
    %v371 = vpop.f32.mrf.mxu0
    %372 = vmatprep.mubr.f32.mxu0 0.0
    %373 = vmatmul.mubr.f32.gmra.mxu0 %v264
    %v374 = vpop.f32.mrf.mxu0
    %v375 = vadd.f32 0.0, %v374
    %v376 = vpop.f32.mrf.mxu0
    %377 = vmatprep.mubr.f32.mxu0 0.0
    %378 = vmatmul.mubr.f32.gmra.mxu0 %v265
    %v379 = vpop.f32.mrf.mxu0
    %v380 = vadd.f32 0.0, %v379
    %v381 = vpop.f32.mrf.mxu0
    %382 = vmatprep.mubr.f32.mxu0 0.0
    %383 = vmatmul.mubr.f32.gmra.mxu0 %v266
    %v384 = vpop.f32.mrf.mxu0
    %v385 = vadd.f32 0.0, %v384
    %v386 = vpop.f32.mrf.mxu0
    %387 = vmatprep.mubr.f32.mxu0 0.0
    %388 = vmatmul.mubr.f32.gmra.mxu0 %v267
    %v389 = vpop.f32.mrf.mxu0
    %v390 = vadd.f32 0.0, %v389
    %v391 = vpop.f32.mrf.mxu0
    %392 = vmatprep.mubr.f32.mxu0 0.0
    %393 = vmatmul.mubr.f32.gmra.mxu0 %v268
    %v394 = vpop.f32.mrf.mxu0
    %v395 = vadd.f32 0.0, %v394
    %v396 = vpop.f32.mrf.mxu0
    %397 = vmatprep.mubr.f32.mxu0 0.0
    %398 = vmatmul.mubr.f32.gmra.mxu0 %v269
    %v399 = vpop.f32.mrf.mxu0
    %v400 = vadd.f32 0.0, %v399
    %v401 = vpop.f32.mrf.mxu0
    %402 = vmatprep.mubr.f32.mxu0 0.0
    %403 = vmatmul.mubr.f32.gmra.mxu0 %v270
    %v404 = vpop.f32.mrf.mxu0
    %v405 = vadd.f32 0.0, %v404
    %v406 = vpop.f32.mrf.mxu0
    %407 = vmatprep.mubr.f32.mxu0 0.0
    %408 = vmatmul.mubr.f32.gmra.mxu0 %v271
    %v409 = vpop.f32.mrf.mxu0
    %v410 = vadd.f32 0.0, %v409
    %v411 = vpop.f32.mrf.mxu0
    %412 = vmatprep.mubr.f32.mxu0 0.0
    %413 = vmatmul.mubr.f32.gmra.mxu0 %v272
    %v414 = vpop.f32.mrf.mxu0
    %v415 = vadd.f32 0.0, %v414
    %v416 = vpop.f32.mrf.mxu0
    %417 = vdwg.mxu0
    %v418 = vmax.f32 %v340, 0.0
    %v419 = vmax.f32 %v345, 0.0
    %v420 = vmax.f32 %v350, 0.0
    %v421 = vmax.f32 %v355, 0.0
    %v422 = vmax.f32 %v360, 0.0
    %v423 = vmax.f32 %v365, 0.0
    %v424 = vmax.f32 %v370, 0.0
    %v425 = vmax.f32 %v375, 0.0
    %v426 = vmax.f32 %v380, 0.0
    %v427 = vmax.f32 %v385, 0.0
    %v428 = vmax.f32 %v390, 0.0
    %v429 = vmax.f32 %v395, 0.0
    %v430 = vmax.f32 %v400, 0.0
    %v431 = vmax.f32 %v405, 0.0
    %v432 = vmax.f32 %v410, 0.0
    %v433 = vmax.f32 %v415, 0.0
    %v434 = vld [vmem:[#allocation2] sm:$0xff]
    %435 = vmatprep.subr.mxu0 0.0
    %436 = vmatpush1.msra.mxu0 %v433
    %437 = vmatprep.subr.mxu0 0.0
    %438 = vmatpush1.msra.mxu0 %v432
    %439 = vmatprep.subr.mxu0 0.0
    %440 = vmatpush1.msra.mxu0 %v431
    %441 = vmatprep.subr.mxu0 0.0
    %442 = vmatpush1.msra.mxu0 %v430
    %443 = vmatprep.subr.mxu0 0.0
    %444 = vmatpush1.msra.mxu0 %v429
    %445 = vmatprep.subr.mxu0 0.0
    %446 = vmatpush1.msra.mxu0 %v428
    %447 = vmatprep.subr.mxu0 0.0
    %448 = vmatpush1.msra.mxu0 %v427
    %449 = vmatprep.subr.mxu0 0.0
    %450 = vmatpush1.msra.mxu0 %v426
    %451 = vmatprep.subr.mxu0 0.0
    %452 = vmatpush1.msra.mxu0 %v425
    %453 = vmatprep.subr.mxu0 0.0
    %454 = vmatpush1.msra.mxu0 %v424
    %455 = vmatprep.subr.mxu0 0.0
    %456 = vmatpush1.msra.mxu0 %v423
    %457 = vmatprep.subr.mxu0 0.0
    %458 = vmatpush1.msra.mxu0 %v422
    %459 = vmatprep.subr.mxu0 0.0
    %460 = vmatpush1.msra.mxu0 %v421
    %461 = vmatprep.subr.mxu0 0.0
    %462 = vmatpush1.msra.mxu0 %v420
    %463 = vmatprep.subr.mxu0 0.0
    %464 = vmatpush1.msra.mxu0 %v419
    %465 = vmatprep.subr.mxu0 0.0
    %466 = vmatpush1.msra.mxu0 %v418
    %467 = vmatprep.subr.mxu0 0.0
    %468 = vmatpush2.msra.mxu0 0.0
    %469 = vmatprep.subr.mxu0 0.0
    %470 = vmatpush2.msra.mxu0 0.0
    %471 = vmatprep.subr.mxu0 0.0
    %472 = vmatpush2.msra.mxu0 0.0
    %473 = vmatprep.subr.mxu0 0.0
    %474 = vmatpush2.msra.mxu0 0.0
    %475 = vmatprep.subr.mxu0 0.0
    %476 = vmatpush2.msra.mxu0 0.0
    %477 = vmatprep.subr.mxu0 0.0
    %478 = vmatpush2.msra.mxu0 0.0
    %479 = vmatprep.subr.mxu0 0.0
    %480 = vmatpush2.msra.mxu0 0.0
    %481 = vmatprep.subr.mxu0 0.0
    %482 = vmatpush2.msra.mxu0 0.0
    %483 = vmatprep.subr.mxu0 0.0
    %484 = vmatpush2.msra.mxu0 0.0
    %485 = vmatprep.subr.mxu0 0.0
    %486 = vmatpush2.msra.mxu0 0.0
    %487 = vmatprep.subr.mxu0 0.0
    %488 = vmatpush2.msra.mxu0 0.0
    %489 = vmatprep.subr.mxu0 0.0
    %490 = vmatpush2.msra.mxu0 0.0
    %491 = vmatprep.subr.mxu0 0.0
    %492 = vmatpush2.msra.mxu0 0.0
    %493 = vmatprep.subr.mxu0 0.0
    %494 = vmatpush2.msra.mxu0 0.0
    %495 = vmatprep.subr.mxu0 0.0
    %496 = vmatpush2.msra.mxu0 0.0
    %497 = vmatprep.subr.mxu0 0.0
    %498 = vmatpush2.msra.mxu0 0.0
    %499 = vmatprep.mubr.f32.mxu0 0.0
    %500 = vmatmul.mubr.f32.gmra.mxu0 %v434
    %v501 = vpop.f32.mrf.mxu0
    %v502 = vadd.f32 0.0, %v501
    %v503 = vpop.f32.mrf.mxu0
    %504 = vdwg.mxu0
    %505 = vst [vmem:[#allocation5] sm:$0xff] %v502
    // Predicated region
    $region22: #{tpu_custom_call.1} parent=1 // pred_check
      _
    $region23: #{tpu_custom_call.1} parent=1 // pred_check_branch
      %507 = sbr.rel (0) target = $region25
    $region24: #{tpu_custom_call.1} parent=1 // pred_region
      %s509 = ssub.s32 128, 128
      %510 = vsyncadd [#allocation4], %s509
      %s512 = sshll.u32 [#allocation5], 4
      %s513 = int_to_ptr.vmem [resolvable:$true] %s512
      %515 = dma.vmem_to_hbm [thread:$0]  %s513, 128, %s4, [#allocation4]
    $region25: #{tpu_custom_call.1} parent=1 // pred_fallthru
      _
    // Predicated region
    $region26: #{tpu_custom_call.1} parent=1 // pred_check
      _
    $region27: #{tpu_custom_call.1} parent=1 // pred_check_branch
      %517 = sbr.rel (0) target = $region29
    $region28: #{tpu_custom_call.1} parent=1 // pred_region
      %518 = dma.done [#allocation4], 128
    $region29: #{tpu_custom_call.1} parent=1 // pred_fallthru
      _
    %519 = vsyncpa [#allocation3], 1
    %520 = vsyncpa [#allocation4], 1

</llo_original>
